<compile_context>
chip_gen: v7x
topology: tpu7x:2x2x1
jax: 0.10.0
libtpu: 0.0.40
codegen_flags: <defaults>
</compile_context>

<pallas_src>
import functools
import numpy as np

import jax
import jax.numpy as jnp
from jax import lax
from jax.experimental import pallas as pl
from jax.experimental.pallas import tpu as pltpu

_TM_MAX = 512                      # max row tile for matmul / layernorm kernels
_VMEM_LIMIT = 48 * 1024 * 1024     # safe on v5e/v6e (128 MiB) and v7x (64 MiB)


def _round_up(x, m):
    return ((x + m - 1) // m) * m


def _largest_divisor_leq(n, cap):
    for d in range(min(n, cap), 0, -1):
        if n % d == 0:
            return d
    return 1


def _cparams(sems):
    return pltpu.CompilerParams(dimension_semantics=sems,
                                vmem_limit_bytes=_VMEM_LIMIT)


def _apply_act(x, act):
    if act == "none":
        return x
    if act == "lrelu0.2":
        return jnp.where(x >= 0, x, 0.2 * x)
    if act == "lrelu0.01":
        return jnp.where(x >= 0, x, 0.01 * x)
    if act == "lrelu0.2_sigmoid":
        return jax.nn.sigmoid(jnp.where(x >= 0, x, 0.2 * x))
    raise ValueError(act)


# ----------------------------------------------------------------------------
# Pallas kernels: fused (LN?) + matmul + bias + act + (residual?)
# ----------------------------------------------------------------------------
def _make_mm_kernel(act, has_ln, has_res):
    def kernel(*refs):
        i = 0
        a_ref = refs[i]; i += 1
        if has_ln:
            g_ref = refs[i]; bln_ref = refs[i + 1]; i += 2
        w_ref = refs[i]; b_ref = refs[i + 1]; i += 2
        if has_res:
            r_ref = refs[i]; i += 1
        o_ref = refs[i]

        if has_ln:
            xf = a_ref[...].astype(jnp.float32)           # LN stats in f32
            mu = jnp.mean(xf, axis=-1, keepdims=True)
            xc = xf - mu
            var = jnp.mean(xc * xc, axis=-1, keepdims=True)
            xf = xc * lax.rsqrt(var + 1e-5) * g_ref[...] + bln_ref[...]
            xm = xf.astype(w_ref.dtype)                   # bf16 into the MXU
        else:
            xm = a_ref[...]
            if xm.dtype != w_ref.dtype:
                xm = xm.astype(w_ref.dtype)
        acc = jnp.dot(xm, w_ref[...], preferred_element_type=jnp.float32)
        acc = acc + b_ref[...]
        acc = _apply_act(acc, act)
        if has_res:
            acc = acc + r_ref[...].astype(jnp.float32)
        o_ref[...] = acc.astype(o_ref.dtype)
    return kernel


def matmul_bias_act(a, w, b, act="none", ln=None, res=None, out_dtype=jnp.float32):
    """(M,K) @ (K,N) + b, optional fused LayerNorm prologue / residual epilogue."""
    M, K = a.shape
    N = w.shape[1]
    tm = min(_TM_MAX, _round_up(M, 8))
    Mp = _round_up(M, tm)
    if Mp != M:
        a = jnp.pad(a, ((0, Mp - M), (0, 0)))
        if res is not None:
            res = jnp.pad(res, ((0, Mp - M), (0, 0)))
    has_ln = ln is not None
    has_res = res is not None

    in_specs = [pl.BlockSpec((tm, K), lambda i: (i, 0))]
    inputs = [a]
    if has_ln:
        g, beta = ln
        in_specs += [pl.BlockSpec((1, K), lambda i: (0, 0)),
                     pl.BlockSpec((1, K), lambda i: (0, 0))]
        inputs += [g.reshape(1, K).astype(jnp.float32),
                   beta.reshape(1, K).astype(jnp.float32)]
    in_specs += [pl.BlockSpec((K, N), lambda i: (0, 0)),
                 pl.BlockSpec((1, N), lambda i: (0, 0))]
    inputs += [w, b.reshape(1, N).astype(jnp.float32)]
    if has_res:
        in_specs += [pl.BlockSpec((tm, N), lambda i: (i, 0))]
        inputs += [res]

    out = pl.pallas_call(
        _make_mm_kernel(act, has_ln, has_res),
        out_shape=jax.ShapeDtypeStruct((Mp, N), out_dtype),
        grid=(Mp // tm,),
        in_specs=in_specs,
        out_specs=pl.BlockSpec((tm, N), lambda i: (i, 0)),
        compiler_params=_cparams(("parallel",)),
    )(*inputs)
    if Mp != M:
        out = out[:M]
    return out


# ----------------------------------------------------------------------------
# Standalone LayerNorm (patch_embed norm / final norm)
# ----------------------------------------------------------------------------
def _ln_kernel(x_ref, g_ref, b_ref, o_ref):
    x = x_ref[...].astype(jnp.float32)
    mu = jnp.mean(x, axis=-1, keepdims=True)
    xc = x - mu
    var = jnp.mean(xc * xc, axis=-1, keepdims=True)
    y = xc * lax.rsqrt(var + 1e-5) * g_ref[...] + b_ref[...]
    o_ref[...] = y.astype(o_ref.dtype)


@functools.partial(jax.jit, static_argnames=("out_dtype",))
def layernorm(x, g, b, out_dtype=jnp.float32):
    shape = x.shape
    C = shape[-1]
    x2 = x.reshape(-1, C)
    M = x2.shape[0]
    tm = min(_TM_MAX, _round_up(M, 8))
    Mp = _round_up(M, tm)
    xp = jnp.pad(x2, ((0, Mp - M), (0, 0))) if Mp != M else x2
    out = pl.pallas_call(
        _ln_kernel,
        out_shape=jax.ShapeDtypeStruct((Mp, C), out_dtype),
        grid=(Mp // tm,),
        in_specs=[pl.BlockSpec((tm, C), lambda i: (i, 0)),
                  pl.BlockSpec((1, C), lambda i: (0, 0)),
                  pl.BlockSpec((1, C), lambda i: (0, 0))],
        out_specs=pl.BlockSpec((tm, C), lambda i: (i, 0)),
        compiler_params=_cparams(("parallel",)),
    )(xp, g.reshape(1, C), b.reshape(1, C))
    if Mp != M:
        out = out[:M]
    return out.reshape(shape)


# ----------------------------------------------------------------------------
# Batched window attention
# ----------------------------------------------------------------------------
def _make_attn_kernel(scale):
    def kernel(q_ref, k_ref, v_ref, bias_ref, o_ref):
        q = q_ref[...]
        k = k_ref[...]
        v = v_ref[...]
        s = jnp.einsum("gnd,gmd->gnm", q, k, preferred_element_type=jnp.float32)
        s = s * scale + bias_ref[...]
        s = s - jnp.max(s, axis=-1, keepdims=True)
        p = jnp.exp(s)
        inv = pl.reciprocal(jnp.sum(p, axis=-1, keepdims=True), approx=True)
        p = (p * inv).astype(v.dtype)
        o = jnp.einsum("gnm,gmd->gnd", p, v, preferred_element_type=jnp.float32)
        o_ref[...] = o.astype(o_ref.dtype)
    return kernel


def window_attention_core(q, k, v, bias, scale):
    """q,k,v: (G, N, hd) bf16 (unscaled); bias: (Gb, N, N) f32 with Gb | G."""
    G, N, hd = q.shape
    Gb = bias.shape[0]
    gt = _largest_divisor_leq(Gb, 64)   # groups per grid step; gt | Gb | G
    nb = Gb // gt
    return pl.pallas_call(
        _make_attn_kernel(scale),
        out_shape=jax.ShapeDtypeStruct((G, N, hd), jnp.bfloat16),
        grid=(G // gt,),
        in_specs=[
            pl.BlockSpec((gt, N, hd), lambda i: (i, 0, 0)),
            pl.BlockSpec((gt, N, hd), lambda i: (i, 0, 0)),
            pl.BlockSpec((gt, N, hd), lambda i: (i, 0, 0)),
            pl.BlockSpec((gt, N, N), lambda i: (i % nb, 0, 0)),
        ],
        out_specs=pl.BlockSpec((gt, N, hd), lambda i: (i, 0, 0)),
        compiler_params=_cparams(("parallel",)),
    )(q, k, v, bias)


# ----------------------------------------------------------------------------
# Convolutions: fused slab kernel (large spatial) + im2col matmul (small spatial)
# ----------------------------------------------------------------------------
def _make_conv3x3_kernel(act, th, ow, cin, cout, hp):
    def kernel(x_hbm, w_ref, b_ref, o_ref, slab, sem):
        n = pl.program_id(0)
        t = pl.program_id(1)
        row0 = n * hp + t * th
        cp = pltpu.make_async_copy(x_hbm.at[pl.ds(row0, th + 2)], slab, sem)
        cp.start()
        cp.wait()
        acc = jnp.zeros((th * ow, cout), jnp.float32)
        for dy in range(3):
            for dx in range(3):
                patch = slab[dy:dy + th, dx:dx + ow, :]
                acc = acc + jnp.dot(patch.reshape(th * ow, cin),
                                    w_ref[dy * 3 + dx],
                                    preferred_element_type=jnp.float32)
        acc = _apply_act(acc + b_ref[...], act)
        o_ref[...] = acc.reshape(1, th, ow, cout).astype(o_ref.dtype)
    return kernel


def _pick_tile_rows(oh):
    for cand in (32, 16, 8, 4, 2, 1):
        if cand <= oh and oh % cand == 0:
            return cand
    return 1


def _conv3x3_slab(xp, wmat, b, act, out_dtype):
    """Fused stride-1 3x3 conv. xp: (N, OH+2, OW+2, Cin) pre-padded; wmat: (9*Cin, Cout)."""
    N, Hp, Wp, Cin = xp.shape
    OH, OW = Hp - 2, Wp - 2
    Cout = wmat.shape[1]
    th = _pick_tile_rows(OH)
    x_rows = xp.reshape(N * Hp, Wp, Cin)              # metadata reshape in HBM
    w3 = wmat.reshape(9, Cin, Cout)
    return pl.pallas_call(
        _make_conv3x3_kernel(act, th, OW, Cin, Cout, Hp),
        out_shape=jax.ShapeDtypeStruct((N, OH, OW, Cout), out_dtype),
        grid=(N, OH // th),
        in_specs=[
            pl.BlockSpec(memory_space=pl.ANY),        # raw HBM; slab DMA'd manually
            pl.BlockSpec((9, Cin, Cout), lambda n, t: (0, 0, 0)),
            pl.BlockSpec((1, Cout), lambda n, t: (0, 0)),
        ],
        out_specs=pl.BlockSpec((1, th, OW, Cout), lambda n, t: (n, t, 0, 0)),
        scratch_shapes=[pltpu.VMEM((th + 2, Wp, Cin), xp.dtype),
                        pltpu.SemaphoreType.DMA],
        compiler_params=_cparams(("parallel", "parallel")),
    )(x_rows, w3, b.reshape(1, Cout).astype(jnp.float32))


@functools.partial(jax.jit, static_argnames=("stride", "padding", "act", "pad_mode",
                                             "out_dtype", "compute_dtype"))
def conv2d(x, wmat, b, stride=1, padding=1, act="none", pad_mode="constant",
           out_dtype=jnp.bfloat16, compute_dtype=jnp.bfloat16):
    """3x3 conv, NHWC activations, weights pre-packed as (9*Cin, Cout)."""
    N, H, W, Cin = x.shape
    Cout = wmat.shape[1]
    KH = KW = 3
    OH = (H + 2 * padding - KH) // stride + 1
    OW = (W + 2 * padding - KW) // stride + 1
    xc = x.astype(compute_dtype)
    wc = wmat.astype(compute_dtype)
    if padding > 0:
        xc = jnp.pad(xc, ((0, 0), (padding, padding), (padding, padding), (0, 0)),
                     mode=pad_mode)
    use_slab = (stride == 1 and padding == 1 and pad_mode == "constant"
                and OH * OW >= 1024)
    if use_slab:
        return _conv3x3_slab(xc, wc, b, act, out_dtype)
    # small-spatial fallback: im2col + fused matmul (cheap at these sizes)
    cols = []
    for ky in range(KH):
        for kx in range(KW):
            cols.append(xc[:, ky:ky + stride * OH:stride, kx:kx + stride * OW:stride, :])
    patches = jnp.concatenate(cols, axis=-1).reshape(N * OH * OW, KH * KW * Cin)
    out = matmul_bias_act(patches, wc, b, act=act, out_dtype=out_dtype)
    return out.reshape(N, OH, OW, Cout)


# ----------------------------------------------------------------------------
# JAX glue: pixel-shuffle, window ops, laplacian
# ----------------------------------------------------------------------------
def pixel_shuffle(x, r):
    N, H, W, C = x.shape
    Co = C // (r * r)
    x = x.reshape(N, H, W, Co, r, r)
    x = x.transpose(0, 1, 4, 2, 5, 3)
    return x.reshape(N, H * r, W * r, Co)


def window_partition(x, ws):
    B, H, W, C = x.shape
    x = x.reshape(B, H // ws, ws, W // ws, ws, C)
    x = x.transpose(0, 1, 3, 2, 4, 5)
    return x.reshape(B * (H // ws) * (W // ws), ws * ws, C)


def window_reverse(wins, ws, B, H, W):
    C = wins.shape[-1]
    x = wins.reshape(B, H // ws, W // ws, ws, ws, C)
    x = x.transpose(0, 1, 3, 2, 4, 5)
    return x.reshape(B, H, W, C)


def laplacian3(x):
    """kornia.laplacian(x, 3): depthwise [[1,1,1],[1,-8,1],[1,1,1]]/16, reflect pad (f32)."""
    C = x.shape[-1]
    k = np.ones((3, 3), np.float32)
    k[1, 1] = -8.0
    k = k / 16.0
    w = np.zeros((3, 3, C, C), np.float32)        # (ky, kx, cin, cout)
    for c in range(C):
        w[:, :, c, c] = k
    wmat = jnp.asarray(w.reshape(9 * C, C))
    return conv2d(x, wmat, jnp.zeros((C,), jnp.float32), stride=1, act="none",
                  pad_mode="reflect", out_dtype=jnp.float32,
                  compute_dtype=jnp.float32)


# ----------------------------------------------------------------------------
# Swin / RSTB / sub-networks
# ----------------------------------------------------------------------------
def build_rel_index(ws):
    coords = np.stack(np.meshgrid(np.arange(ws), np.arange(ws), indexing="ij"))
    cf = coords.reshape(2, -1)
    rel = (cf[:, :, None] - cf[:, None, :]).transpose(1, 2, 0).astype(np.int32)
    rel[:, :, 0] += ws - 1
    rel[:, :, 1] += ws - 1
    rel[:, :, 0] *= 2 * ws - 1
    return jnp.asarray(rel.sum(-1))  # (ws*ws, ws*ws)


def build_attn_mask(H, W, window, shift):
    img_mask = np.zeros((1, H, W, 1), np.float32)
    cnt = 0
    for hs in (slice(0, -window), slice(-window, -shift), slice(-shift, None)):
        for ws_ in (slice(0, -window), slice(-window, -shift), slice(-shift, None)):
            img_mask[:, hs, ws_, :] = cnt
            cnt += 1
    mw = np.asarray(window_partition(jnp.asarray(img_mask), window)).reshape(-1, window * window)
    am = mw[:, None, :] - mw[:, :, None]
    am = np.where(am != 0, -100.0, 0.0).astype(np.float32)
    return jnp.asarray(am)  # (nW, N, N)


def build_swin_cfg(H1, W1, window_size=8, num_heads=8):
    if min(H1, W1) <= window_size:
        window, shift = min(H1, W1), 0
    else:
        window, shift = window_size, window_size // 2
    return {
        "window": window,
        "shift": shift,
        "num_heads": num_heads,
        "rel_index": build_rel_index(window),
        "attn_mask": build_attn_mask(H1, W1, window, shift) if shift > 0 else None,
    }


@functools.partial(jax.jit, static_argnames=("H", "W", "window", "shift", "num_heads"))
def swin_block(p, x, rel_index, attn_mask, *, H, W, window, shift, num_heads):
    B, L, C = x.shape
    hd = C // num_heads
    shortcut = x

    xr = x.reshape(B, H, W, C)
    if shift > 0:
        xr = jnp.roll(xr, (-shift, -shift), axis=(1, 2))
    xw = window_partition(xr, window)              # (B*nW, N, C)
    BnW, Nw, _ = xw.shape
    nW = BnW // B

    # fused LayerNorm1 + qkv (LN is per-token so it commutes with roll / partition)
    qkv = matmul_bias_act(xw.reshape(BnW * Nw, C), p["qkv"]["w"], p["qkv"]["b"],
                          act="none", ln=(p["ln1"]["g"], p["ln1"]["b"]),
                          out_dtype=jnp.bfloat16)
    qkv = qkv.reshape(BnW, Nw, 3, num_heads, hd).transpose(2, 0, 3, 1, 4)
    q = qkv[0].reshape(BnW * num_heads, Nw, hd)
    k = qkv[1].reshape(BnW * num_heads, Nw, hd)
    v = qkv[2].reshape(BnW * num_heads, Nw, hd)

    rel = p["rel_bias"][rel_index.reshape(-1)].reshape(Nw, Nw, num_heads)
    rel = jnp.transpose(rel, (2, 0, 1)).astype(jnp.float32)      # (nH, N, N)
    if shift > 0:
        bias = (rel[None, :, :, :] + attn_mask[:, None, :, :]).reshape(
            nW * num_heads, Nw, Nw)
    else:
        bias = rel   # not broadcast over windows/batch; index_map reuses the block

    o = window_attention_core(q, k, v, bias, scale=float(hd) ** -0.5)
    o = o.reshape(BnW, num_heads, Nw, hd).transpose(0, 2, 1, 3).reshape(BnW * Nw, C)
    o = matmul_bias_act(o, p["proj"]["w"], p["proj"]["b"], act="none",
                        out_dtype=jnp.float32)
    xo = window_reverse(o.reshape(BnW, Nw, C), window, B, H, W)
    if shift > 0:
        xo = jnp.roll(xo, (shift, shift), axis=(1, 2))
    x = shortcut + xo.reshape(B, L, C)

    # fused LayerNorm2 + fc1; exact GELU (erf, PyTorch nn.GELU default) as XLA op;
    # fc2 with fused residual add.
    y = matmul_bias_act(x.reshape(B * L, C), p["fc1"]["w"], p["fc1"]["b"],
                        act="none", ln=(p["ln2"]["g"], p["ln2"]["b"]),
                        out_dtype=jnp.float32)
    y = jax.nn.gelu(y, approximate=False)
    x = matmul_bias_act(y, p["fc2"]["w"], p["fc2"]["b"], act="none",
                        res=x.reshape(B * L, C),
                        out_dtype=jnp.float32).reshape(B, L, C)
    return x


def rstb_forward(p, x, x_size, cfg):
    B, L, C = x.shape
    H, W = x_size
    res = x
    for i, bp in enumerate(p["blocks"]):
        shift = cfg["shift"] if (i % 2 == 1) else 0
        x = swin_block(bp, x, cfg["rel_index"], cfg["attn_mask"],
                       H=H, W=W, window=cfg["window"], shift=shift,
                       num_heads=cfg["num_heads"])
    xi = conv2d(x.reshape(B, H, W, C), p["conv"]["w"], p["conv"]["b"],
                stride=1, act="none", out_dtype=jnp.float32)     # patch_unembed + conv
    return xi.reshape(B, L, C) + res                             # patch_embed + residual


def begin_edge_conv(p, x):
    x = conv2d(x, p["c1"]["w"], p["c1"]["b"], stride=1, act="lrelu0.2")
    x = conv2d(x, p["c2"]["w"], p["c2"]["b"], stride=1, act="lrelu0.2")
    x = conv2d(x, p["c3"]["w"], p["c3"]["b"], stride=2, act="lrelu0.2")
    x = conv2d(x, p["c4"]["w"], p["c4"]["b"], stride=1, act="lrelu0.2")
    x = conv2d(x, p["c5"]["w"], p["c5"]["b"], stride=2, act="lrelu0.2")
    x = conv2d(x, p["c6"]["w"], p["c6"]["b"], stride=1, act="lrelu0.2")
    return x


def dense_net_forward(p, x, cfg):
    B, H, W, C = x.shape
    x = layernorm(x.reshape(B, H * W, C), p["pe_norm"]["g"], p["pe_norm"]["b"],
                  out_dtype=jnp.float32)                          # patch_embed + norm
    for lp in p["layers"]:
        x = rstb_forward(lp, x, (H, W), cfg)
    x = layernorm(x, p["norm"]["g"], p["norm"]["b"], out_dtype=jnp.float32)
    x = x.reshape(B, H, W, C)                                     # patch_unembed
    # conv_after_body ('1conv'): conv s2 + lrelu, conv + lrelu, conv s2
    x = conv2d(x, p["cab1"]["w"], p["cab1"]["b"], stride=2, act="lrelu0.2")
    x = conv2d(x, p["cab2"]["w"], p["cab2"]["b"], stride=1, act="lrelu0.2")
    x = conv2d(x, p["cab3"]["w"], p["cab3"]["b"], stride=2, act="none")
    return x


def mask_conv_forward(p, x):
    x = conv2d(x, p["c1"]["w"], p["c1"]["b"], stride=1, act="lrelu0.2")
    x = conv2d(x, p["c2"]["w"], p["c2"]["b"], stride=2, act="lrelu0.2")
    x = conv2d(x, p["c3"]["w"], p["c3"]["b"], stride=2, act="lrelu0.2_sigmoid")
    return x


def _upsample_x16(up_params, x):
    for cp_ in up_params:
        x = conv2d(x, cp_["w"], cp_["b"], stride=1, act="none")
        x = pixel_shuffle(x, 2)
    return x


def final_conv_forward(p, x):
    x = conv2d(x, p["pre"]["w"], p["pre"]["b"], stride=1, act="lrelu0.01")
    x = _upsample_x16(p["up"], x)     # self.upsample(x)
    x = _upsample_x16(p["up"], x)     # self.upsample(x) again (shared weights)
    x = conv2d(x, p["last"]["w"], p["last"]["b"], stride=1, act="none",
               out_dtype=jnp.float32)
    return x


def eesn_forward(params, x_nchw, cfg):
    x = jnp.transpose(x_nchw, (0, 2, 3, 1))   # NCHW -> NHWC
    x_lap = laplacian3(x)                     # f32 (returned)
    x1 = begin_edge_conv(params["begin"], x_lap)
    x2 = dense_net_forward(params["dense"], x1, cfg)
    x3 = mask_conv_forward(params["mask"], x1)
    x4 = x3 * x2                              # elementwise gating
    x_learned_lap = final_conv_forward(params["final"], x4)
    return (jnp.transpose(x_learned_lap, (0, 3, 1, 2)),
            jnp.transpose(x_lap, (0, 3, 1, 2)))


# ----------------------------------------------------------------------------
# Deterministic parameter construction (weights pre-packed + pre-cast to bf16)
# ----------------------------------------------------------------------------
class _Key:
    def __init__(self, key):
        self._k = key

    def __call__(self):
        self._k, sub = jax.random.split(self._k)
        return sub


def conv_p(rng, cin, cout, k=3, wscale=0.05):
    w = jax.random.normal(rng(), (k * k * cin, cout), jnp.float32) * wscale
    return {"w": w.astype(jnp.bfloat16),
            "b": jax.random.normal(rng(), (cout,), jnp.float32) * 0.01}


def lin_p(rng, cin, cout, wscale=0.02):
    w = jax.random.normal(rng(), (cin, cout), jnp.float32) * wscale
    return {"w": w.astype(jnp.bfloat16), "b": jnp.zeros((cout,), jnp.float32)}


def ln_p(c):
    return {"g": jnp.ones((c,), jnp.float32), "b": jnp.zeros((c,), jnp.float32)}


def build_swin_block_params(rng, dim, num_heads, mlp_ratio, window):
    hidden = int(dim * mlp_ratio)
    return {
        "ln1": ln_p(dim),
        "qkv": lin_p(rng, dim, 3 * dim),
        "proj": lin_p(rng, dim, dim),
        "ln2": ln_p(dim),
        "fc1": lin_p(rng, dim, hidden),
        "fc2": lin_p(rng, hidden, dim),
        "rel_bias": jax.random.normal(
            rng(), ((2 * window - 1) ** 2, num_heads), jnp.float32) * 0.02,
    }


def build_eesn_params(rng, cfg, embed_dim=64, out_c=256,
                      depths=(6, 6, 6), num_heads=8, mlp_ratio=2.0):
    begin = {
        "c1": conv_p(rng, 3, 64), "c2": conv_p(rng, 64, 64),
        "c3": conv_p(rng, 64, 128), "c4": conv_p(rng, 128, 128),
        "c5": conv_p(rng, 128, 256), "c6": conv_p(rng, 256, 64),
    }
    layers = []
    for d in depths:
        blocks = [build_swin_block_params(rng, embed_dim, num_heads, mlp_ratio,
                                          cfg["window"]) for _ in range(d)]
        layers.append({"blocks": blocks, "conv": conv_p(rng, embed_dim, embed_dim)})
    dense = {
        "pe_norm": ln_p(embed_dim),
        "layers": layers,
        "norm": ln_p(embed_dim),
        "cab1": conv_p(rng, embed_dim, out_c // 2),
        "cab2": conv_p(rng, out_c // 2, out_c // 2),
        "cab3": conv_p(rng, out_c // 2, out_c),
    }
    mask = {
        "c1": conv_p(rng, 64, 64),
        "c2": conv_p(rng, 64, 128),
        "c3": conv_p(rng, 128, 256),
    }
    num_feat = 64
    final = {
        "pre": conv_p(rng, 256, num_feat),
        "up": [conv_p(rng, num_feat, 4 * num_feat) for _ in range(4)],  # Upsample(16, 64)
        "last": conv_p(rng, num_feat, 3),
    }
    return {"begin": begin, "dense": dense, "mask": mask, "final": final}


# ----------------------------------------------------------------------------
if __name__ == "__main__":
    B, C, H, W = 2, 3, 16, 16
    root = jax.random.PRNGKey(0)
    kx, kp = jax.random.split(root)
    x = jax.random.normal(kx, (B, C, H, W), jnp.float32)

    # Feature resolution entering the Swin body (BeginEdgeConv downsamples by 4).
    H1, W1 = H // 4, W // 4
    cfg = build_swin_cfg(H1, W1, window_size=8, num_heads=8)
    params = build_eesn_params(_Key(kp), cfg)

    x_learned_lap, x_lap = eesn_forward(params, x, cfg)
    jax.block_until_ready((x_learned_lap, x_lap))

    assert x_learned_lap.shape == (B, 3, 16 * H, 16 * W), x_learned_lap.shape
    assert x_lap.shape == (B, 3, H, W), x_lap.shape
    assert bool(jnp.all(jnp.isfinite(x_learned_lap))) and bool(jnp.all(jnp.isfinite(x_lap)))
    print("KERNEL_OK")
</pallas_src>

<mosaic_0001>
module attributes {stable_mosaic.version = 11 : i64} {
  func.func @kernel(%arg0: i32, %arg1: memref<512x27xf32, #tpu.memory_space<vmem>>, %arg2: memref<27x3xf32, #tpu.memory_space<vmem>>, %arg3: memref<1x3xf32, #tpu.memory_space<vmem>>, %arg4: memref<512x3xf32, #tpu.memory_space<vmem>>) attributes {dimension_semantics = [#tpu.dimension_semantics<parallel>], iteration_bounds = array<i64: 1>, scalar_prefetch = 0 : i64, scratch_operands = 0 : i64, tpu.core_type = #tpu.core_type<tc>, window_params = [{transform_indices = @transform_0, window_bounds = array<i64: 512, 27>}, {pipeline_mode = #tpu.pipeline_mode<synchronous>, transform_indices = @transform_1, window_bounds = array<i64: 27, 3>}, {pipeline_mode = #tpu.pipeline_mode<synchronous>, transform_indices = @transform_2, window_bounds = array<i64: 1, 3>}, {transform_indices = @transform_3, window_bounds = array<i64: 512, 3>}]} {
    %c0 = arith.constant 0 : index
    %c0_0 = arith.constant 0 : index
    %0 = vector.load %arg1[%c0, %c0_0] : memref<512x27xf32, #tpu.memory_space<vmem>>, vector<512x27xf32>
    %c0_1 = arith.constant 0 : index
    %c0_2 = arith.constant 0 : index
    %1 = vector.load %arg2[%c0_1, %c0_2] : memref<27x3xf32, #tpu.memory_space<vmem>>, vector<27x3xf32>
    %cst = arith.constant dense<0.000000e+00> : vector<512x3xf32>
    %2 = tpu.matmul %0, %1, %cst {dimension_numbers = #tpu.dot_dimension_numbers<[1], [0], [0], [1], [0, 0, 1, 1], [], []>} : vector<512x27xf32>, vector<27x3xf32>, vector<512x3xf32> -> vector<512x3xf32>
    %c0_3 = arith.constant 0 : index
    %c0_4 = arith.constant 0 : index
    %3 = vector.load %arg3[%c0_3, %c0_4] : memref<1x3xf32, #tpu.memory_space<vmem>>, vector<1x3xf32>
    %4 = vector.broadcast %3 : vector<1x3xf32> to vector<512x3xf32>
    %5 = arith.addf %2, %4 : vector<512x3xf32>
    %c0_5 = arith.constant 0 : index
    %c0_6 = arith.constant 0 : index
    %6 = vector.load %arg4[%c0_5, %c0_6] : memref<512x3xf32, #tpu.memory_space<vmem>>, vector<512x3xf32>
    tpu.vector_store %arg4[%c0_5, %c0_6], %5 {strides = array<i32>} : memref<512x3xf32, #tpu.memory_space<vmem>>, vector<512x3xf32>,
    return
  }
  func.func @transform_0(%arg0: i32) -> (i32, i32) {
    %c0_i32 = arith.constant 0 : i32
    %c0_i32_0 = arith.constant 0 : i32
    return %arg0, %c0_i32 : i32, i32
  }
  func.func @transform_1(%arg0: i32) -> (i32, i32) {
    %c0_i32 = arith.constant 0 : i32
    %c0_i32_0 = arith.constant 0 : i32
    %c0_i32_1 = arith.constant 0 : i32
    return %c0_i32, %c0_i32_0 : i32, i32
  }
  func.func @transform_2(%arg0: i32) -> (i32, i32) {
    %c0_i32 = arith.constant 0 : i32
    %c0_i32_0 = arith.constant 0 : i32
    %c0_i32_1 = arith.constant 0 : i32
    return %c0_i32, %c0_i32_0 : i32, i32
  }
  func.func @transform_3(%arg0: i32) -> (i32, i32) {
    %c0_i32 = arith.constant 0 : i32
    %c0_i32_0 = arith.constant 0 : i32
    return %arg0, %c0_i32 : i32, i32
  }
}

</mosaic_0001>

<llo_original>
// kernel: conv2d.1
$region0: #{conv2d.1}
  #allocation0 [shape = 'u32[]', space=smem, size = 0x4, offset = 0x4, fixed_abs, tag = 'smem constant byte address 0x4 - core index']
  #allocation1 [shape = 'u32[144,128]{1,0:T(1,128)}', space=vmem, size = 0x12000, scoped, tag = 'internal scratch']
  %s0 = inlined_call_operand.vmem [shape: f32[512,27], index: 0, kind: input, shape index: {}]
  %s1 = inlined_call_operand.vmem [shape: f32[27,3], index: 1, kind: input, shape index: {}]
  %s2 = inlined_call_operand.vmem [shape: f32[1,3], index: 2, kind: input, shape index: {}]
  %s3 = inlined_call_operand.vmem [shape: f32[512,3], index: 3, kind: output, shape index: {}]
  %s4 = sld [smem:[#allocation0]]
  $region22: #{conv2d.1} parent=0
    _
  %s6 = ssub.s32 1, %s4
  %s7 = scalar_select 0, %s6, %s4
  // Predicated region
  $region2: #{conv2d.1} parent=0 // pred_check
    _
  $region3: #{conv2d.1} parent=0 // pred_check_branch
    %9 = sbr.rel (0) target = $region5
  $region4: #{conv2d.1} parent=0 // pred_region
    _
  $region5: #{conv2d.1} parent=0 // pred_fallthru
    _
  // Predicated region
  $region6: #{conv2d.1} parent=0 // pred_check
    _
  $region7: #{conv2d.1} parent=0 // pred_check_branch
    %11 = sbr.rel (0) target = $region9
  $region8: #{conv2d.1} parent=0 // pred_region
    _
  $region9: #{conv2d.1} parent=0 // pred_fallthru
    _
  // Predicated region
  $region10: #{conv2d.1} parent=0 // pred_check
    _
  $region11: #{conv2d.1} parent=0 // pred_check_branch
    %13 = sbr.rel (0) target = $region13
  $region12: #{conv2d.1} parent=0 // pred_region
    _
  $region13: #{conv2d.1} parent=0 // pred_fallthru
    _
  %v14 = vld [vmem:[%s0] sm:$0xff]
  %v15 = vld [vmem:[%s0 + $0x8] sm:$0xff]
  %v16 = vld [vmem:[%s0 + $0x10] sm:$0xff]
  %v17 = vld [vmem:[%s0 + $0x18] sm:$0xff]
  %v18 = vld [vmem:[%s0 + $0x20] sm:$0xff]
  %v19 = vld [vmem:[%s0 + $0x28] sm:$0xff]
  %v20 = vld [vmem:[%s0 + $0x30] sm:$0xff]
  %v21 = vld [vmem:[%s0 + $0x38] sm:$0xff]
  %v22 = vld [vmem:[%s0 + $0x40] sm:$0xff]
  %v23 = vld [vmem:[%s0 + $0x48] sm:$0xff]
  %v24 = vld [vmem:[%s0 + $0x50] sm:$0xff]
  %v25 = vld [vmem:[%s0 + $0x58] sm:$0xff]
  %v26 = vld [vmem:[%s0 + $0x60] sm:$0xff]
  %v27 = vld [vmem:[%s0 + $0x68] sm:$0xff]
  %v28 = vld [vmem:[%s0 + $0x70] sm:$0xff]
  %v29 = vld [vmem:[%s0 + $0x78] sm:$0xff]
  %v30 = vld [vmem:[%s0 + $0x80] sm:$0xff]
  %v31 = vld [vmem:[%s0 + $0x88] sm:$0xff]
  %v32 = vld [vmem:[%s0 + $0x90] sm:$0xff]
  %v33 = vld [vmem:[%s0 + $0x98] sm:$0xff]
  %v34 = vld [vmem:[%s0 + $0xa0] sm:$0xff]
  %v35 = vld [vmem:[%s0 + $0xa8] sm:$0xff]
  %v36 = vld [vmem:[%s0 + $0xb0] sm:$0xff]
  %v37 = vld [vmem:[%s0 + $0xb8] sm:$0xff]
  %v38 = vld [vmem:[%s0 + $0xc0] sm:$0xff]
  %v39 = vld [vmem:[%s0 + $0xc8] sm:$0xff]
  %v40 = vld [vmem:[%s0 + $0xd0] sm:$0xff]
  %v41 = vld [vmem:[%s0 + $0xd8] sm:$0xff]
  %v42 = vld [vmem:[%s0 + $0xe0] sm:$0xff]
  %v43 = vld [vmem:[%s0 + $0xe8] sm:$0xff]
  %v44 = vld [vmem:[%s0 + $0xf0] sm:$0xff]
  %v45 = vld [vmem:[%s0 + $0xf8] sm:$0xff]
  %v46 = vld [vmem:[%s0 + $0x100] sm:$0xff]
  %v47 = vld [vmem:[%s0 + $0x108] sm:$0xff]
  %v48 = vld [vmem:[%s0 + $0x110] sm:$0xff]
  %v49 = vld [vmem:[%s0 + $0x118] sm:$0xff]
  %v50 = vld [vmem:[%s0 + $0x120] sm:$0xff]
  %v51 = vld [vmem:[%s0 + $0x128] sm:$0xff]
  %v52 = vld [vmem:[%s0 + $0x130] sm:$0xff]
  %v53 = vld [vmem:[%s0 + $0x138] sm:$0xff]
  %v54 = vld [vmem:[%s0 + $0x140] sm:$0xff]
  %v55 = vld [vmem:[%s0 + $0x148] sm:$0xff]
  %v56 = vld [vmem:[%s0 + $0x150] sm:$0xff]
  %v57 = vld [vmem:[%s0 + $0x158] sm:$0xff]
  %v58 = vld [vmem:[%s0 + $0x160] sm:$0xff]
  %v59 = vld [vmem:[%s0 + $0x168] sm:$0xff]
  %v60 = vld [vmem:[%s0 + $0x170] sm:$0xff]
  %v61 = vld [vmem:[%s0 + $0x178] sm:$0xff]
  %v62 = vld [vmem:[%s0 + $0x180] sm:$0xff]
  %v63 = vld [vmem:[%s0 + $0x188] sm:$0xff]
  %v64 = vld [vmem:[%s0 + $0x190] sm:$0xff]
  %v65 = vld [vmem:[%s0 + $0x198] sm:$0xff]
  %v66 = vld [vmem:[%s0 + $0x1a0] sm:$0xff]
  %v67 = vld [vmem:[%s0 + $0x1a8] sm:$0xff]
  %v68 = vld [vmem:[%s0 + $0x1b0] sm:$0xff]
  %v69 = vld [vmem:[%s0 + $0x1b8] sm:$0xff]
  %v70 = vld [vmem:[%s0 + $0x1c0] sm:$0xff]
  %v71 = vld [vmem:[%s0 + $0x1c8] sm:$0xff]
  %v72 = vld [vmem:[%s0 + $0x1d0] sm:$0xff]
  %v73 = vld [vmem:[%s0 + $0x1d8] sm:$0xff]
  %v74 = vld [vmem:[%s0 + $0x1e0] sm:$0xff]
  %v75 = vld [vmem:[%s0 + $0x1e8] sm:$0xff]
  %v76 = vld [vmem:[%s0 + $0x1f0] sm:$0xff]
  %v77 = vld [vmem:[%s0 + $0x1f8] sm:$0xff]
  %v78 = vld [vmem:[%s1] sm:$0xff]
  %v79 = vld [vmem:[%s1 + $0x8] sm:$0xff]
  %v80 = vld [vmem:[%s1 + $0x10] sm:$0xff]
  %v81 = vld [vmem:[%s1 + $0x18] sm:$0x7]
  %v82 = vld [vmem:[%s2] sm:$0x1]
  %v84 = vlaneseq
  %v85 = vshrl.u32 %v84, 7
  %v86 = vsub.s32 0, %v85
  %v87 = vrot.slane %v82, %v86
  %vm89 = vcmask 220160
  %v91 = vsel %vm89, %v14, 0
  %v94 = vsel %vm89, %v15, 0
  %v97 = vsel %vm89, %v16, 0
  %v100 = vsel %vm89, %v17, 0
  %v103 = vsel %vm89, %v18, 0
  %v106 = vsel %vm89, %v19, 0
  %v109 = vsel %vm89, %v20, 0
  %v112 = vsel %vm89, %v21, 0
  %v115 = vsel %vm89, %v22, 0
  %v118 = vsel %vm89, %v23, 0
  %v121 = vsel %vm89, %v24, 0
  %v124 = vsel %vm89, %v25, 0
  %v127 = vsel %vm89, %v26, 0
  %v130 = vsel %vm89, %v27, 0
  %v133 = vsel %vm89, %v28, 0
  %v136 = vsel %vm89, %v29, 0
  %v139 = vsel %vm89, %v30, 0
  %v142 = vsel %vm89, %v31, 0
  %v145 = vsel %vm89, %v32, 0
  %v148 = vsel %vm89, %v33, 0
  %v151 = vsel %vm89, %v34, 0
  %v154 = vsel %vm89, %v35, 0
  %v157 = vsel %vm89, %v36, 0
  %v160 = vsel %vm89, %v37, 0
  %v163 = vsel %vm89, %v38, 0
  %v166 = vsel %vm89, %v39, 0
  %v169 = vsel %vm89, %v40, 0
  %v172 = vsel %vm89, %v41, 0
  %v175 = vsel %vm89, %v42, 0
  %v178 = vsel %vm89, %v43, 0
  %v181 = vsel %vm89, %v44, 0
  %v184 = vsel %vm89, %v45, 0
  %v187 = vsel %vm89, %v46, 0
  %v190 = vsel %vm89, %v47, 0
  %v193 = vsel %vm89, %v48, 0
  %v196 = vsel %vm89, %v49, 0
  %v199 = vsel %vm89, %v50, 0
  %v202 = vsel %vm89, %v51, 0
  %v205 = vsel %vm89, %v52, 0
  %v208 = vsel %vm89, %v53, 0
  %v211 = vsel %vm89, %v54, 0
  %v214 = vsel %vm89, %v55, 0
  %v217 = vsel %vm89, %v56, 0
  %v220 = vsel %vm89, %v57, 0
  %v223 = vsel %vm89, %v58, 0
  %v226 = vsel %vm89, %v59, 0
  %v229 = vsel %vm89, %v60, 0
  %v232 = vsel %vm89, %v61, 0
  %v235 = vsel %vm89, %v62, 0
  %v238 = vsel %vm89, %v63, 0
  %v241 = vsel %vm89, %v64, 0
  %v244 = vsel %vm89, %v65, 0
  %v247 = vsel %vm89, %v66, 0
  %v250 = vsel %vm89, %v67, 0
  %v253 = vsel %vm89, %v68, 0
  %v256 = vsel %vm89, %v69, 0
  %v259 = vsel %vm89, %v70, 0
  %v262 = vsel %vm89, %v71, 0
  %v265 = vsel %vm89, %v72, 0
  %v268 = vsel %vm89, %v73, 0
  %v271 = vsel %vm89, %v74, 0
  %v274 = vsel %vm89, %v75, 0
  %v277 = vsel %vm89, %v76, 0
  %v280 = vsel %vm89, %v77, 0
  %vm282 = vcmask 1042432
  %v284 = vsel %vm282, %v81, 0
  %286 = vmatprep.subr.mxu0 0.0
  %287 = vmatpush1.msra.mxu0 %v78
  %288 = vmatprep.subr.mxu0 0.0
  %289 = vmatpush1.msra.mxu0 %v79
  %290 = vmatprep.subr.mxu0 0.0
  %291 = vmatpush1.msra.mxu0 %v80
  %292 = vmatprep.subr.mxu0 0.0
  %293 = vmatpush1.msra.mxu0 %v284
  %294 = vmatprep.subr.mxu0 0.0
  %295 = vmatpush1.msra.mxu0 0.0
  %296 = vmatprep.subr.mxu0 0.0
  %297 = vmatpush1.msra.mxu0 0.0
  %298 = vmatprep.subr.mxu0 0.0
  %299 = vmatpush1.msra.mxu0 0.0
  %300 = vmatprep.subr.mxu0 0.0
  %301 = vmatpush1.msra.mxu0 0.0
  %302 = vmatprep.subr.mxu0 0.0
  %303 = vmatpush1.msra.mxu0 0.0
  %304 = vmatprep.subr.mxu0 0.0
  %305 = vmatpush1.msra.mxu0 0.0
  %306 = vmatprep.subr.mxu0 0.0
  %307 = vmatpush1.msra.mxu0 0.0
  %308 = vmatprep.subr.mxu0 0.0
  %309 = vmatpush1.msra.mxu0 0.0
  %310 = vmatprep.subr.mxu0 0.0
  %311 = vmatpush1.msra.mxu0 0.0
  %312 = vmatprep.subr.mxu0 0.0
  %313 = vmatpush1.msra.mxu0 0.0
  %314 = vmatprep.subr.mxu0 0.0
  %315 = vmatpush1.msra.mxu0 0.0
  %316 = vmatprep.subr.mxu0 0.0
  %317 = vmatpush1.msra.mxu0 0.0
  %318 = vmatprep.subr.mxu0 0.0
  %319 = vmatpush1.msra.mxu0 0.0
  %320 = vmatprep.subr.mxu0 0.0
  %321 = vmatpush1.msra.mxu0 0.0
  %322 = vmatprep.subr.mxu0 0.0
  %323 = vmatpush1.msra.mxu0 0.0
  %324 = vmatprep.subr.mxu0 0.0
  %325 = vmatpush1.msra.mxu0 0.0
  %326 = vmatprep.subr.mxu0 0.0
  %327 = vmatpush1.msra.mxu0 0.0
  %328 = vmatprep.subr.mxu0 0.0
  %329 = vmatpush1.msra.mxu0 0.0
  %330 = vmatprep.subr.mxu0 0.0
  %331 = vmatpush1.msra.mxu0 0.0
  %332 = vmatprep.subr.mxu0 0.0
  %333 = vmatpush1.msra.mxu0 0.0
  %334 = vmatprep.subr.mxu0 0.0
  %335 = vmatpush1.msra.mxu0 0.0
  %336 = vmatprep.subr.mxu0 0.0
  %337 = vmatpush1.msra.mxu0 0.0
  %338 = vmatprep.subr.mxu0 0.0
  %339 = vmatpush1.msra.mxu0 0.0
  %340 = vmatprep.subr.mxu0 0.0
  %341 = vmatpush1.msra.mxu0 0.0
  %342 = vmatprep.subr.mxu0 0.0
  %343 = vmatpush1.msra.mxu0 0.0
  %344 = vmatprep.subr.mxu0 0.0
  %345 = vmatpush1.msra.mxu0 0.0
  %346 = vmatprep.subr.mxu0 0.0
  %347 = vmatpush1.msra.mxu0 0.0
  %348 = vmatprep.subr.mxu0 0.0
  %349 = vmatpush1.msra.mxu0 0.0
  %350 = vmatprep.mubr.f32.mxu0 0.0
  %351 = vmatmul.mubr.f32.gmra.mrb[0].mxu0 %v91
  %v352 = vpop.f32.mrb[0].mxu0
  %v353 = vadd.f32 %v87, %v352
  %v354 = vpop.f32.mrb[0].mxu0
  %355 = vmatprep.mubr.f32.mxu0 0.0
  %356 = vmatmul.mubr.f32.gmra.mrb[0].mxu0 %v94
  %v357 = vpop.f32.mrb[0].mxu0
  %v358 = vadd.f32 %v87, %v357
  %v359 = vpop.f32.mrb[0].mxu0
  %360 = vmatprep.mubr.f32.mxu0 0.0
  %361 = vmatmul.mubr.f32.gmra.mrb[0].mxu0 %v97
  %v362 = vpop.f32.mrb[0].mxu0
  %v363 = vadd.f32 %v87, %v362
  %v364 = vpop.f32.mrb[0].mxu0
  %365 = vmatprep.mubr.f32.mxu0 0.0
  %366 = vmatmul.mubr.f32.gmra.mrb[0].mxu0 %v100
  %v367 = vpop.f32.mrb[0].mxu0
  %v368 = vadd.f32 %v87, %v367
  %v369 = vpop.f32.mrb[0].mxu0
  %370 = vmatprep.mubr.f32.mxu0 0.0
  %371 = vmatmul.mubr.f32.gmra.mrb[0].mxu0 %v103
  %v372 = vpop.f32.mrb[0].mxu0
  %v373 = vadd.f32 %v87, %v372
  %v374 = vpop.f32.mrb[0].mxu0
  %375 = vmatprep.mubr.f32.mxu0 0.0
  %376 = vmatmul.mubr.f32.gmra.mrb[0].mxu0 %v106
  %v377 = vpop.f32.mrb[0].mxu0
  %v378 = vadd.f32 %v87, %v377
  %v379 = vpop.f32.mrb[0].mxu0
  %380 = vmatprep.mubr.f32.mxu0 0.0
  %381 = vmatmul.mubr.f32.gmra.mrb[0].mxu0 %v109
  %v382 = vpop.f32.mrb[0].mxu0
  %v383 = vadd.f32 %v87, %v382
  %v384 = vpop.f32.mrb[0].mxu0
  %385 = vmatprep.mubr.f32.mxu0 0.0
  %386 = vmatmul.mubr.f32.gmra.mrb[0].mxu0 %v112
  %v387 = vpop.f32.mrb[0].mxu0
  %v388 = vadd.f32 %v87, %v387
  %v389 = vpop.f32.mrb[0].mxu0
  %390 = vmatprep.mubr.f32.mxu0 0.0
  %391 = vmatmul.mubr.f32.gmra.mrb[0].mxu0 %v115
  %v392 = vpop.f32.mrb[0].mxu0
  %v393 = vadd.f32 %v87, %v392
  %v394 = vpop.f32.mrb[0].mxu0
  %395 = vmatprep.mubr.f32.mxu0 0.0
  %396 = vmatmul.mubr.f32.gmra.mrb[0].mxu0 %v118
  %v397 = vpop.f32.mrb[0].mxu0
  %v398 = vadd.f32 %v87, %v397
  %v399 = vpop.f32.mrb[0].mxu0
  %400 = vmatprep.mubr.f32.mxu0 0.0
  %401 = vmatmul.mubr.f32.gmra.mrb[0].mxu0 %v121
  %v402 = vpop.f32.mrb[0].mxu0
  %v403 = vadd.f32 %v87, %v402
  %v404 = vpop.f32.mrb[0].mxu0
  %405 = vmatprep.mubr.f32.mxu0 0.0
  %406 = vmatmul.mubr.f32.gmra.mrb[0].mxu0 %v124
  %v407 = vpop.f32.mrb[0].mxu0
  %v408 = vadd.f32 %v87, %v407
  %v409 = vpop.f32.mrb[0].mxu0
  %410 = vmatprep.mubr.f32.mxu0 0.0
  %411 = vmatmul.mubr.f32.gmra.mrb[0].mxu0 %v127
  %v412 = vpop.f32.mrb[0].mxu0
  %v413 = vadd.f32 %v87, %v412
  %v414 = vpop.f32.mrb[0].mxu0
  %415 = vmatprep.mubr.f32.mxu0 0.0
  %416 = vmatmul.mubr.f32.gmra.mrb[0].mxu0 %v130
  %v417 = vpop.f32.mrb[0].mxu0
  %v418 = vadd.f32 %v87, %v417
  %v419 = vpop.f32.mrb[0].mxu0
  %420 = vmatprep.mubr.f32.mxu0 0.0
  %421 = vmatmul.mubr.f32.gmra.mrb[0].mxu0 %v133
  %v422 = vpop.f32.mrb[0].mxu0
  %v423 = vadd.f32 %v87, %v422
  %v424 = vpop.f32.mrb[0].mxu0
  %425 = vmatprep.mubr.f32.mxu0 0.0
  %426 = vmatmul.mubr.f32.gmra.mrb[0].mxu0 %v136
  %v427 = vpop.f32.mrb[0].mxu0
  %v428 = vadd.f32 %v87, %v427
  %v429 = vpop.f32.mrb[0].mxu0
  %430 = vmatprep.mubr.f32.mxu0 0.0
  %431 = vmatmul.mubr.f32.gmra.mrb[0].mxu0 %v139
  %v432 = vpop.f32.mrb[0].mxu0
  %v433 = vadd.f32 %v87, %v432
  %v434 = vpop.f32.mrb[0].mxu0
  %435 = vmatprep.mubr.f32.mxu0 0.0
  %436 = vmatmul.mubr.f32.gmra.mrb[0].mxu0 %v142
  %v437 = vpop.f32.mrb[0].mxu0
  %v438 = vadd.f32 %v87, %v437
  %v439 = vpop.f32.mrb[0].mxu0
  %440 = vmatprep.mubr.f32.mxu0 0.0
  %441 = vmatmul.mubr.f32.gmra.mrb[0].mxu0 %v145
  %v442 = vpop.f32.mrb[0].mxu0
  %v443 = vadd.f32 %v87, %v442
  %v444 = vpop.f32.mrb[0].mxu0
  %445 = vmatprep.mubr.f32.mxu0 0.0
  %446 = vmatmul.mubr.f32.gmra.mrb[0].mxu0 %v148
  %v447 = vpop.f32.mrb[0].mxu0
  %v448 = vadd.f32 %v87, %v447
  %v449 = vpop.f32.mrb[0].mxu0
  %450 = vmatprep.mubr.f32.mxu0 0.0
  %451 = vmatmul.mubr.f32.gmra.mrb[0].mxu0 %v151
  %v452 = vpop.f32.mrb[0].mxu0
  %v453 = vadd.f32 %v87, %v452
  %v454 = vpop.f32.mrb[0].mxu0
  %455 = vmatprep.mubr.f32.mxu0 0.0
  %456 = vmatmul.mubr.f32.gmra.mrb[0].mxu0 %v154
  %v457 = vpop.f32.mrb[0].mxu0
  %v458 = vadd.f32 %v87, %v457
  %v459 = vpop.f32.mrb[0].mxu0
  %460 = vmatprep.mubr.f32.mxu0 0.0
  %461 = vmatmul.mubr.f32.gmra.mrb[0].mxu0 %v157
  %v462 = vpop.f32.mrb[0].mxu0
  %v463 = vadd.f32 %v87, %v462
  %v464 = vpop.f32.mrb[0].mxu0
  %465 = vmatprep.mubr.f32.mxu0 0.0
  %466 = vmatmul.mubr.f32.gmra.mrb[0].mxu0 %v160
  %v467 = vpop.f32.mrb[0].mxu0
  %v468 = vadd.f32 %v87, %v467
  %v469 = vpop.f32.mrb[0].mxu0
  %470 = vmatprep.mubr.f32.mxu0 0.0
  %471 = vmatmul.mubr.f32.gmra.mrb[0].mxu0 %v163
  %v472 = vpop.f32.mrb[0].mxu0
  %v473 = vadd.f32 %v87, %v472
  %v474 = vpop.f32.mrb[0].mxu0
  %475 = vmatprep.mubr.f32.mxu0 0.0
  %476 = vmatmul.mubr.f32.gmra.mrb[0].mxu0 %v166
  %v477 = vpop.f32.mrb[0].mxu0
  %v478 = vadd.f32 %v87, %v477
  %v479 = vpop.f32.mrb[0].mxu0
  %480 = vmatprep.mubr.f32.mxu0 0.0
  %481 = vmatmul.mubr.f32.gmra.mrb[0].mxu0 %v169
  %v482 = vpop.f32.mrb[0].mxu0
  %v483 = vadd.f32 %v87, %v482
  %v484 = vpop.f32.mrb[0].mxu0
  %485 = vmatprep.mubr.f32.mxu0 0.0
  %486 = vmatmul.mubr.f32.gmra.mrb[0].mxu0 %v172
  %v487 = vpop.f32.mrb[0].mxu0
  %v488 = vadd.f32 %v87, %v487
  %v489 = vpop.f32.mrb[0].mxu0
  %490 = vmatprep.mubr.f32.mxu0 0.0
  %491 = vmatmul.mubr.f32.gmra.mrb[0].mxu0 %v175
  %v492 = vpop.f32.mrb[0].mxu0
  %v493 = vadd.f32 %v87, %v492
  %v494 = vpop.f32.mrb[0].mxu0
  %495 = vmatprep.mubr.f32.mxu0 0.0
  %496 = vmatmul.mubr.f32.gmra.mrb[0].mxu0 %v178
  %v497 = vpop.f32.mrb[0].mxu0
  %v498 = vadd.f32 %v87, %v497
  %v499 = vpop.f32.mrb[0].mxu0
  %500 = vmatprep.mubr.f32.mxu0 0.0
  %501 = vmatmul.mubr.f32.gmra.mrb[0].mxu0 %v181
  %v502 = vpop.f32.mrb[0].mxu0
  %v503 = vadd.f32 %v87, %v502
  %v504 = vpop.f32.mrb[0].mxu0
  %505 = vmatprep.mubr.f32.mxu0 0.0
  %506 = vmatmul.mubr.f32.gmra.mrb[0].mxu0 %v184
  %v507 = vpop.f32.mrb[0].mxu0
  %v508 = vadd.f32 %v87, %v507
  %v509 = vpop.f32.mrb[0].mxu0
  %510 = vmatprep.mubr.f32.mxu0 0.0
  %511 = vmatmul.mubr.f32.gmra.mrb[0].mxu0 %v187
  %v512 = vpop.f32.mrb[0].mxu0
  %v513 = vadd.f32 %v87, %v512
  %v514 = vpop.f32.mrb[0].mxu0
  %515 = vmatprep.mubr.f32.mxu0 0.0
  %516 = vmatmul.mubr.f32.gmra.mrb[0].mxu0 %v190
  %v517 = vpop.f32.mrb[0].mxu0
  %v518 = vadd.f32 %v87, %v517
  %v519 = vpop.f32.mrb[0].mxu0
  %520 = vmatprep.mubr.f32.mxu0 0.0
  %521 = vmatmul.mubr.f32.gmra.mrb[0].mxu0 %v193
  %v522 = vpop.f32.mrb[0].mxu0
  %v523 = vadd.f32 %v87, %v522
  %v524 = vpop.f32.mrb[0].mxu0
  %525 = vmatprep.mubr.f32.mxu0 0.0
  %526 = vmatmul.mubr.f32.gmra.mrb[0].mxu0 %v196
  %v527 = vpop.f32.mrb[0].mxu0
  %v528 = vadd.f32 %v87, %v527
  %v529 = vpop.f32.mrb[0].mxu0
  %530 = vmatprep.mubr.f32.mxu0 0.0
  %531 = vmatmul.mubr.f32.gmra.mrb[0].mxu0 %v199
  %v532 = vpop.f32.mrb[0].mxu0
  %v533 = vadd.f32 %v87, %v532
  %v534 = vpop.f32.mrb[0].mxu0
  %535 = vmatprep.mubr.f32.mxu0 0.0
  %536 = vmatmul.mubr.f32.gmra.mrb[0].mxu0 %v202
  %v537 = vpop.f32.mrb[0].mxu0
  %v538 = vadd.f32 %v87, %v537
  %v539 = vpop.f32.mrb[0].mxu0
  %540 = vmatprep.mubr.f32.mxu0 0.0
  %541 = vmatmul.mubr.f32.gmra.mrb[0].mxu0 %v205
  %v542 = vpop.f32.mrb[0].mxu0
  %v543 = vadd.f32 %v87, %v542
  %v544 = vpop.f32.mrb[0].mxu0
  %545 = vmatprep.mubr.f32.mxu0 0.0
  %546 = vmatmul.mubr.f32.gmra.mrb[0].mxu0 %v208
  %v547 = vpop.f32.mrb[0].mxu0
  %v548 = vadd.f32 %v87, %v547
  %v549 = vpop.f32.mrb[0].mxu0
  %550 = vmatprep.mubr.f32.mxu0 0.0
  %551 = vmatmul.mubr.f32.gmra.mrb[0].mxu0 %v211
  %v552 = vpop.f32.mrb[0].mxu0
  %v553 = vadd.f32 %v87, %v552
  %v554 = vpop.f32.mrb[0].mxu0
  %555 = vmatprep.mubr.f32.mxu0 0.0
  %556 = vmatmul.mubr.f32.gmra.mrb[0].mxu0 %v214
  %v557 = vpop.f32.mrb[0].mxu0
  %v558 = vadd.f32 %v87, %v557
  %v559 = vpop.f32.mrb[0].mxu0
  %560 = vmatprep.mubr.f32.mxu0 0.0
  %561 = vmatmul.mubr.f32.gmra.mrb[0].mxu0 %v217
  %v562 = vpop.f32.mrb[0].mxu0
  %v563 = vadd.f32 %v87, %v562
  %v564 = vpop.f32.mrb[0].mxu0
  %565 = vmatprep.mubr.f32.mxu0 0.0
  %566 = vmatmul.mubr.f32.gmra.mrb[0].mxu0 %v220
  %v567 = vpop.f32.mrb[0].mxu0
  %v568 = vadd.f32 %v87, %v567
  %v569 = vpop.f32.mrb[0].mxu0
  %570 = vmatprep.mubr.f32.mxu0 0.0
  %571 = vmatmul.mubr.f32.gmra.mrb[0].mxu0 %v223
  %v572 = vpop.f32.mrb[0].mxu0
  %v573 = vadd.f32 %v87, %v572
  %v574 = vpop.f32.mrb[0].mxu0
  %575 = vmatprep.mubr.f32.mxu0 0.0
  %576 = vmatmul.mubr.f32.gmra.mrb[0].mxu0 %v226
  %v577 = vpop.f32.mrb[0].mxu0
  %v578 = vadd.f32 %v87, %v577
  %v579 = vpop.f32.mrb[0].mxu0
  %580 = vmatprep.mubr.f32.mxu0 0.0
  %581 = vmatmul.mubr.f32.gmra.mrb[0].mxu0 %v229
  %v582 = vpop.f32.mrb[0].mxu0
  %v583 = vadd.f32 %v87, %v582
  %v584 = vpop.f32.mrb[0].mxu0
  %585 = vmatprep.mubr.f32.mxu0 0.0
  %586 = vmatmul.mubr.f32.gmra.mrb[0].mxu0 %v232
  %v587 = vpop.f32.mrb[0].mxu0
  %v588 = vadd.f32 %v87, %v587
  %v589 = vpop.f32.mrb[0].mxu0
  %590 = vmatprep.mubr.f32.mxu0 0.0
  %591 = vmatmul.mubr.f32.gmra.mrb[0].mxu0 %v235
  %v592 = vpop.f32.mrb[0].mxu0
  %v593 = vadd.f32 %v87, %v592
  %v594 = vpop.f32.mrb[0].mxu0
  %595 = vmatprep.mubr.f32.mxu0 0.0
  %596 = vmatmul.mubr.f32.gmra.mrb[0].mxu0 %v238
  %v597 = vpop.f32.mrb[0].mxu0
  %v598 = vadd.f32 %v87, %v597
  %v599 = vpop.f32.mrb[0].mxu0
  %600 = vmatprep.mubr.f32.mxu0 0.0
  %601 = vmatmul.mubr.f32.gmra.mrb[0].mxu0 %v241
  %v602 = vpop.f32.mrb[0].mxu0
  %v603 = vadd.f32 %v87, %v602
  %v604 = vpop.f32.mrb[0].mxu0
  %605 = vmatprep.mubr.f32.mxu0 0.0
  %606 = vmatmul.mubr.f32.gmra.mrb[0].mxu0 %v244
  %v607 = vpop.f32.mrb[0].mxu0
  %v608 = vadd.f32 %v87, %v607
  %v609 = vpop.f32.mrb[0].mxu0
  %610 = vmatprep.mubr.f32.mxu0 0.0
  %611 = vmatmul.mubr.f32.gmra.mrb[0].mxu0 %v247
  %v612 = vpop.f32.mrb[0].mxu0
  %v613 = vadd.f32 %v87, %v612
  %v614 = vpop.f32.mrb[0].mxu0
  %615 = vmatprep.mubr.f32.mxu0 0.0
  %616 = vmatmul.mubr.f32.gmra.mrb[0].mxu0 %v250
  %v617 = vpop.f32.mrb[0].mxu0
  %v618 = vadd.f32 %v87, %v617
  %v619 = vpop.f32.mrb[0].mxu0
  %620 = vmatprep.mubr.f32.mxu0 0.0
  %621 = vmatmul.mubr.f32.gmra.mrb[0].mxu0 %v253
  %v622 = vpop.f32.mrb[0].mxu0
  %v623 = vadd.f32 %v87, %v622
  %v624 = vpop.f32.mrb[0].mxu0
  %625 = vmatprep.mubr.f32.mxu0 0.0
  %626 = vmatmul.mubr.f32.gmra.mrb[0].mxu0 %v256
  %v627 = vpop.f32.mrb[0].mxu0
  %v628 = vadd.f32 %v87, %v627
  %v629 = vpop.f32.mrb[0].mxu0
  %630 = vmatprep.mubr.f32.mxu0 0.0
  %631 = vmatmul.mubr.f32.gmra.mrb[0].mxu0 %v259
  %v632 = vpop.f32.mrb[0].mxu0
  %v633 = vadd.f32 %v87, %v632
  %v634 = vpop.f32.mrb[0].mxu0
  %635 = vmatprep.mubr.f32.mxu0 0.0
  %636 = vmatmul.mubr.f32.gmra.mrb[0].mxu0 %v262
  %v637 = vpop.f32.mrb[0].mxu0
  %v638 = vadd.f32 %v87, %v637
  %v639 = vpop.f32.mrb[0].mxu0
  %640 = vmatprep.mubr.f32.mxu0 0.0
  %641 = vmatmul.mubr.f32.gmra.mrb[0].mxu0 %v265
  %v642 = vpop.f32.mrb[0].mxu0
  %v643 = vadd.f32 %v87, %v642
  %v644 = vpop.f32.mrb[0].mxu0
  %645 = vmatprep.mubr.f32.mxu0 0.0
  %646 = vmatmul.mubr.f32.gmra.mrb[0].mxu0 %v268
  %v647 = vpop.f32.mrb[0].mxu0
  %v648 = vadd.f32 %v87, %v647
  %v649 = vpop.f32.mrb[0].mxu0
  %650 = vmatprep.mubr.f32.mxu0 0.0
  %651 = vmatmul.mubr.f32.gmra.mrb[0].mxu0 %v271
  %v652 = vpop.f32.mrb[0].mxu0
  %v653 = vadd.f32 %v87, %v652
  %v654 = vpop.f32.mrb[0].mxu0
  %655 = vmatprep.mubr.f32.mxu0 0.0
  %656 = vmatmul.mubr.f32.gmra.mrb[0].mxu0 %v274
  %v657 = vpop.f32.mrb[0].mxu0
  %v658 = vadd.f32 %v87, %v657
  %v659 = vpop.f32.mrb[0].mxu0
  %660 = vmatprep.mubr.f32.mxu0 0.0
  %661 = vmatmul.mubr.f32.gmra.mrb[0].mxu0 %v277
  %v662 = vpop.f32.mrb[0].mxu0
  %v663 = vadd.f32 %v87, %v662
  %v664 = vpop.f32.mrb[0].mxu0
  %665 = vmatprep.mubr.f32.mxu0 0.0
  %666 = vmatmul.mubr.f32.gmra.mrb[0].mxu0 %v280
  %v667 = vpop.f32.mrb[0].mxu0
  %v668 = vadd.f32 %v87, %v667
  %v669 = vpop.f32.mrb[0].mxu0
  %670 = vdwg.mxu0
  %vm671 = vcmask 23552
  %672 = vst.msk [vmem:[%s3] sm:$0xff] %vm671, %v353
  %673 = vst.msk [vmem:[%s3 + $0x8] sm:$0xff] %vm671, %v358
  %674 = vst.msk [vmem:[%s3 + $0x10] sm:$0xff] %vm671, %v363
  %675 = vst.msk [vmem:[%s3 + $0x18] sm:$0xff] %vm671, %v368
  %676 = vst.msk [vmem:[%s3 + $0x20] sm:$0xff] %vm671, %v373
  %677 = vst.msk [vmem:[%s3 + $0x28] sm:$0xff] %vm671, %v378
  %678 = vst.msk [vmem:[%s3 + $0x30] sm:$0xff] %vm671, %v383
  %679 = vst.msk [vmem:[%s3 + $0x38] sm:$0xff] %vm671, %v388
  %680 = vst.msk [vmem:[%s3 + $0x40] sm:$0xff] %vm671, %v393
  %681 = vst.msk [vmem:[%s3 + $0x48] sm:$0xff] %vm671, %v398
  %682 = vst.msk [vmem:[%s3 + $0x50] sm:$0xff] %vm671, %v403
  %683 = vst.msk [vmem:[%s3 + $0x58] sm:$0xff] %vm671, %v408
  %684 = vst.msk [vmem:[%s3 + $0x60] sm:$0xff] %vm671, %v413
  %685 = vst.msk [vmem:[%s3 + $0x68] sm:$0xff] %vm671, %v418
  %686 = vst.msk [vmem:[%s3 + $0x70] sm:$0xff] %vm671, %v423
  %687 = vst.msk [vmem:[%s3 + $0x78] sm:$0xff] %vm671, %v428
  %688 = vst.msk [vmem:[%s3 + $0x80] sm:$0xff] %vm671, %v433
  %689 = vst.msk [vmem:[%s3 + $0x88] sm:$0xff] %vm671, %v438
  %690 = vst.msk [vmem:[%s3 + $0x90] sm:$0xff] %vm671, %v443
  %691 = vst.msk [vmem:[%s3 + $0x98] sm:$0xff] %vm671, %v448
  %692 = vst.msk [vmem:[%s3 + $0xa0] sm:$0xff] %vm671, %v453
  %693 = vst.msk [vmem:[%s3 + $0xa8] sm:$0xff] %vm671, %v458
  %694 = vst.msk [vmem:[%s3 + $0xb0] sm:$0xff] %vm671, %v463
  %695 = vst.msk [vmem:[%s3 + $0xb8] sm:$0xff] %vm671, %v468
  %696 = vst.msk [vmem:[%s3 + $0xc0] sm:$0xff] %vm671, %v473
  %697 = vst.msk [vmem:[%s3 + $0xc8] sm:$0xff] %vm671, %v478
  %698 = vst.msk [vmem:[%s3 + $0xd0] sm:$0xff] %vm671, %v483
  %699 = vst.msk [vmem:[%s3 + $0xd8] sm:$0xff] %vm671, %v488
  %700 = vst.msk [vmem:[%s3 + $0xe0] sm:$0xff] %vm671, %v493
  %701 = vst.msk [vmem:[%s3 + $0xe8] sm:$0xff] %vm671, %v498
  %702 = vst.msk [vmem:[%s3 + $0xf0] sm:$0xff] %vm671, %v503
  %703 = vst.msk [vmem:[%s3 + $0xf8] sm:$0xff] %vm671, %v508
  %704 = vst.msk [vmem:[%s3 + $0x100] sm:$0xff] %vm671, %v513
  %705 = vst.msk [vmem:[%s3 + $0x108] sm:$0xff] %vm671, %v518
  %706 = vst.msk [vmem:[%s3 + $0x110] sm:$0xff] %vm671, %v523
  %707 = vst.msk [vmem:[%s3 + $0x118] sm:$0xff] %vm671, %v528
  %708 = vst.msk [vmem:[%s3 + $0x120] sm:$0xff] %vm671, %v533
  %709 = vst.msk [vmem:[%s3 + $0x128] sm:$0xff] %vm671, %v538
  %710 = vst.msk [vmem:[%s3 + $0x130] sm:$0xff] %vm671, %v543
  %711 = vst.msk [vmem:[%s3 + $0x138] sm:$0xff] %vm671, %v548
  %712 = vst.msk [vmem:[%s3 + $0x140] sm:$0xff] %vm671, %v553
  %713 = vst.msk [vmem:[%s3 + $0x148] sm:$0xff] %vm671, %v558
  %714 = vst.msk [vmem:[%s3 + $0x150] sm:$0xff] %vm671, %v563
  %715 = vst.msk [vmem:[%s3 + $0x158] sm:$0xff] %vm671, %v568
  %716 = vst.msk [vmem:[%s3 + $0x160] sm:$0xff] %vm671, %v573
  %717 = vst.msk [vmem:[%s3 + $0x168] sm:$0xff] %vm671, %v578
  %718 = vst.msk [vmem:[%s3 + $0x170] sm:$0xff] %vm671, %v583
  %719 = vst.msk [vmem:[%s3 + $0x178] sm:$0xff] %vm671, %v588
  %720 = vst.msk [vmem:[%s3 + $0x180] sm:$0xff] %vm671, %v593
  %721 = vst.msk [vmem:[%s3 + $0x188] sm:$0xff] %vm671, %v598
  %722 = vst.msk [vmem:[%s3 + $0x190] sm:$0xff] %vm671, %v603
  %723 = vst.msk [vmem:[%s3 + $0x198] sm:$0xff] %vm671, %v608
  %724 = vst.msk [vmem:[%s3 + $0x1a0] sm:$0xff] %vm671, %v613
  %725 = vst.msk [vmem:[%s3 + $0x1a8] sm:$0xff] %vm671, %v618
  %726 = vst.msk [vmem:[%s3 + $0x1b0] sm:$0xff] %vm671, %v623
  %727 = vst.msk [vmem:[%s3 + $0x1b8] sm:$0xff] %vm671, %v628
  %728 = vst.msk [vmem:[%s3 + $0x1c0] sm:$0xff] %vm671, %v633
  %729 = vst.msk [vmem:[%s3 + $0x1c8] sm:$0xff] %vm671, %v638
  %730 = vst.msk [vmem:[%s3 + $0x1d0] sm:$0xff] %vm671, %v643
  %731 = vst.msk [vmem:[%s3 + $0x1d8] sm:$0xff] %vm671, %v648
  %732 = vst.msk [vmem:[%s3 + $0x1e0] sm:$0xff] %vm671, %v653
  %733 = vst.msk [vmem:[%s3 + $0x1e8] sm:$0xff] %vm671, %v658
  %734 = vst.msk [vmem:[%s3 + $0x1f0] sm:$0xff] %vm671, %v663
  %735 = vst.msk [vmem:[%s3 + $0x1f8] sm:$0xff] %vm671, %v668
  // Predicated region
  $region14: #{conv2d.1} parent=0 // pred_check
    _
  $region15: #{conv2d.1} parent=0 // pred_check_branch
    %737 = sbr.rel (0) target = $region17
  $region16: #{conv2d.1} parent=0 // pred_region
    _
  $region17: #{conv2d.1} parent=0 // pred_fallthru
    _
  // Predicated region
  $region18: #{conv2d.1} parent=0 // pred_check
    _
  $region19: #{conv2d.1} parent=0 // pred_check_branch
    %739 = sbr.rel (0) target = $region21
  $region20: #{conv2d.1} parent=0 // pred_region
    _
  $region21: #{conv2d.1} parent=0 // pred_fallthru
    _

</llo_original>
